<compile_context>
chip_gen: v6e
topology: v6e:2x2x1
jax: 0.10.0
libtpu: 0.0.40
codegen_flags: <defaults>
</compile_context>

<pallas_src>
import functools

import jax
import jax.numpy as jnp
from jax.experimental import pallas as pl
from jax.experimental.pallas import tpu as pltpu


def _scaling_kernel(x_ref, s_ref, y_ref, *, invert):
    # x_ref: (TB, D) tile of activations, s_ref: (1, D) log-scale vector.
    sign = -1.0 if invert else 1.0
    # Hoisted once per tile: exp() goes to the EUP (free slot when mem-bound).
    scale = jnp.exp(sign * s_ref[...])                 # (1, D)
    y_ref[...] = scale * x_ref[...]                    # broadcast over rows


def _pick_tile_rows(rows, cols, budget_bytes=24 * 1024 * 1024):
    """Largest row tile such that double-buffered x + y f32 tiles fit budget.

    4 buffers (x in + y out, each double-buffered) * TB * cols * 4 bytes.
    24 MiB leaves headroom inside a 32 MiB scoped-VMEM limit (safe on v7x's
    64 MiB physical VMEM as well as v5e/v6e).
    """
    per_row_bytes = 16 * cols                          # 4 bufs * 4 B/elem
    tb = max(1, budget_bytes // per_row_bytes)
    tb = min(tb, rows)
    if tb < rows:
        # Partial tiles must keep the sublane (second-to-last) dim a multiple
        # of 8; a full-extent block (tb == rows) is always legal.
        tb = max(8, (tb // 8) * 8)
    return tb


def scaling_layer(x, log_scale_vector, logdet, invert=False, donate_x=False):
    """Pallas TPU implementation of ScalingLayer.forward.

    Args:
      x:                (B, D) float32 activations.
      log_scale_vector: (1, D) float32 parameter.
      logdet:           scalar float32 running log-determinant.
      invert:           static bool (inverse pass).
      donate_x:         alias y onto x's HBM buffer (only if caller no longer
                        needs x).

    Returns:
      (y, new_logdet) with y of shape (B, D) and new_logdet a scalar.
    """
    x = jnp.asarray(x, jnp.float32)
    s = jnp.asarray(log_scale_vector, jnp.float32).reshape(1, -1)
    logdet = jnp.asarray(logdet, jnp.float32)

    B, D = x.shape

    # --- lane-dense folding: make the last dim a multiple of 128 if cheap ---
    fold = 1
    if D < 128 and (128 % D == 0) and (B % (128 // D) == 0):
        fold = 128 // D
    if fold > 1:
        x_in = x.reshape(B // fold, fold * D)          # row-major: rows concat
        s_in = jnp.tile(s, (1, fold))                  # repeat scale per fold
    else:
        x_in, s_in = x, s
    Bf, Df = x_in.shape

    # --- batch-axis grid with large, VMEM-budgeted row tiles ---
    tb = _pick_tile_rows(Bf, Df)
    grid = (pl.cdiv(Bf, tb),)

    kernel = functools.partial(_scaling_kernel, invert=invert)
    y = pl.pallas_call(
        kernel,
        out_shape=jax.ShapeDtypeStruct((Bf, Df), jnp.float32),
        grid=grid,
        in_specs=[
            pl.BlockSpec((tb, Df), lambda i: (i, 0)),   # streamed x tiles
            pl.BlockSpec((1, Df), lambda i: (0, 0)),    # resident log-scale
        ],
        out_specs=pl.BlockSpec((tb, Df), lambda i: (i, 0)),
        compiler_params=pltpu.CompilerParams(
            dimension_semantics=("parallel",),          # megacore on v7x
            vmem_limit_bytes=32 * 1024 * 1024,
        ),
        input_output_aliases=({0: 0} if donate_x else {}),
    )(x_in, s_in)

    if fold > 1:
        y = y.reshape(B, D)

    # Scalar log-det path stays in plain JAX (O(D); keeps it off the VMEM
    # pipeline and avoids per-grid-step redundant writes under "parallel").
    sign = -1.0 if invert else 1.0
    new_logdet = logdet + sign * jnp.sum(s)
    return y, new_logdet


if __name__ == "__main__":
    key = jax.random.PRNGKey(0)
    k_param, k_x, k_ld = jax.random.split(key, 3)

    batch, data_dim = 8, 32

    # Deterministic "parameter" init (torch.randn analogue).
    log_scale_vector = jax.random.normal(k_param, (1, data_dim), jnp.float32)
    x = jax.random.normal(k_x, (batch, data_dim), jnp.float32)
    logdet = jax.random.normal(k_ld, (), jnp.float32)

    # Forward (non-inverted) pass through the Pallas kernel.
    y, new_logdet = scaling_layer(x, log_scale_vector, logdet, invert=False)
    y = jax.block_until_ready(y)
    new_logdet = jax.block_until_ready(new_logdet)

    # Reference check in plain JAX.
    y_ref = jnp.exp(log_scale_vector) * x
    logdet_ref = logdet + jnp.sum(log_scale_vector)
    assert jnp.allclose(y, y_ref, atol=1e-5, rtol=1e-5)
    assert jnp.allclose(new_logdet, logdet_ref, atol=1e-5, rtol=1e-5)

    # Inverted pass check (round-trips back to x and the original logdet).
    y_inv, logdet_inv = scaling_layer(y, log_scale_vector, new_logdet, invert=True)
    y_inv = jax.block_until_ready(y_inv)
    logdet_inv = jax.block_until_ready(logdet_inv)
    assert jnp.allclose(y_inv, x, atol=1e-5, rtol=1e-5)
    assert jnp.allclose(logdet_inv, logdet, atol=1e-5, rtol=1e-5)

    print("KERNEL_OK")
</pallas_src>

<mosaic_0001>
module attributes {stable_mosaic.version = 11 : i64} {
  func.func @_scaling_kernel(%arg0: i32, %arg1: memref<2x128xf32, #tpu.memory_space<vmem>>, %arg2: memref<1x128xf32, #tpu.memory_space<vmem>>, %arg3: memref<2x128xf32, #tpu.memory_space<vmem>>) attributes {dimension_semantics = [#tpu.dimension_semantics<parallel>], iteration_bounds = array<i64: 1>, scalar_prefetch = 0 : i64, scratch_operands = 0 : i64, tpu.core_type = #tpu.core_type<tc>, window_params = [{transform_indices = @transform_0, window_bounds = array<i64: 2, 128>}, {pipeline_mode = #tpu.pipeline_mode<synchronous>, transform_indices = @transform_1, window_bounds = array<i64: 1, 128>}, {transform_indices = @transform_2, window_bounds = array<i64: 2, 128>}]} {
    %c0 = arith.constant 0 : index
    %c0_0 = arith.constant 0 : index
    %0 = vector.load %arg2[%c0, %c0_0] : memref<1x128xf32, #tpu.memory_space<vmem>>, vector<1x128xf32>
    %cst = arith.constant 1.000000e+00 : f32
    %1 = vector.broadcast %cst : f32 to vector<1x128xf32>
    %2 = arith.mulf %1, %0 : vector<1x128xf32>
    %3 = math.exp %2 : vector<1x128xf32>
    %c0_1 = arith.constant 0 : index
    %c0_2 = arith.constant 0 : index
    %4 = vector.load %arg1[%c0_1, %c0_2] : memref<2x128xf32, #tpu.memory_space<vmem>>, vector<2x128xf32>
    %5 = vector.broadcast %3 : vector<1x128xf32> to vector<2x128xf32>
    %6 = arith.mulf %5, %4 : vector<2x128xf32>
    %c0_3 = arith.constant 0 : index
    %c0_4 = arith.constant 0 : index
    %7 = vector.load %arg3[%c0_3, %c0_4] : memref<2x128xf32, #tpu.memory_space<vmem>>, vector<2x128xf32>
    tpu.vector_store %arg3[%c0_3, %c0_4], %6 {strides = array<i32>} : memref<2x128xf32, #tpu.memory_space<vmem>>, vector<2x128xf32>,
    return
  }
  func.func @transform_0(%arg0: i32) -> (i32, i32) {
    %c0_i32 = arith.constant 0 : i32
    %c0_i32_0 = arith.constant 0 : i32
    return %arg0, %c0_i32 : i32, i32
  }
  func.func @transform_1(%arg0: i32) -> (i32, i32) {
    %c0_i32 = arith.constant 0 : i32
    %c0_i32_0 = arith.constant 0 : i32
    %c0_i32_1 = arith.constant 0 : i32
    return %c0_i32, %c0_i32_0 : i32, i32
  }
  func.func @transform_2(%arg0: i32) -> (i32, i32) {
    %c0_i32 = arith.constant 0 : i32
    %c0_i32_0 = arith.constant 0 : i32
    return %arg0, %c0_i32 : i32, i32
  }
}

</mosaic_0001>

<llo_original>
// kernel: tpu_custom_call.1
$region0: #{tpu_custom_call.1}
  #allocation0 [shape = 'u32[]', space=smem, size = 0x4, offset = 0x4, fixed_abs, tag = 'smem constant byte address 0x4 - core index']
  #allocation1 [shape = 'u32[144,128]{1,0:T(1,128)}', space=vmem, size = 0x12000, scoped, tag = 'internal scratch']
  %s0 = inlined_call_operand.hbm [shape: f32[2,128], index: 0, kind: input, shape index: {}]
  %s1 = inlined_call_operand.vmem [shape: f32[1,128], index: 1, kind: input, shape index: {}]
  %s2 = inlined_call_operand.hbm [shape: f32[2,128], index: 2, kind: output, shape index: {}]
  %s3 = sld [smem:[#allocation0]]
  $region22: #{tpu_custom_call.1} parent=0
    _
  %s5 = ssub.s32 1, %s3
  %s6 = scalar_select 0, %s5, %s3
  $region1: #{tpu_custom_call.1} parent=0
    #allocation2 [shape = 'u8[1024]{0}', space=vmem, size = 0x400, scoped, tag = 'input window, operand 0, single buffered']
    #allocation3 [shape = 's32[1]{0}', space=sflag, size = 0x4, scoped, tag = 'scoped memory for tpu_custom_call.1']
    #allocation4 [shape = 's32[1]{0}', space=sflag, size = 0x4, scoped, tag = 'scoped memory for tpu_custom_call.1']
    #allocation5 [shape = 'u8[1024]{0}', space=vmem, size = 0x400, scoped, tag = 'output window, operand 0, single buffered']
    %7 = vsyncpa [#allocation3], 0
    %8 = vsyncpa [#allocation4], 0
    // Predicated region
    $region2: #{tpu_custom_call.1} parent=1 // pred_check
      _
    $region3: #{tpu_custom_call.1} parent=1 // pred_check_branch
      %10 = sbr.rel (0) target = $region5
    $region4: #{tpu_custom_call.1} parent=1 // pred_region
      %s12 = ssub.s32 32, 32
      %13 = vsyncadd [#allocation3], %s12
      %s15 = sshll.u32 [#allocation2], 4
      %s16 = int_to_ptr.vmem [resolvable:$true] %s15
      %18 = dma.hbm_to_vmem [thread:$0]  %s0, 32, %s16, [#allocation3]
    $region5: #{tpu_custom_call.1} parent=1 // pred_fallthru
      _
    // Predicated region
    $region6: #{tpu_custom_call.1} parent=1 // pred_check
      _
    $region7: #{tpu_custom_call.1} parent=1 // pred_check_branch
      %20 = sbr.rel (0) target = $region9
    $region8: #{tpu_custom_call.1} parent=1 // pred_region
      _
    $region9: #{tpu_custom_call.1} parent=1 // pred_fallthru
      _
    // Predicated region
    $region10: #{tpu_custom_call.1} parent=1 // pred_check
      _
    $region11: #{tpu_custom_call.1} parent=1 // pred_check_branch
      %22 = sbr.rel (0) target = $region13
    $region12: #{tpu_custom_call.1} parent=1 // pred_region
      %23 = dma.done [#allocation3], 32
    $region13: #{tpu_custom_call.1} parent=1 // pred_fallthru
      _
    %v24 = vld [vmem:[%s1] sm:$0x1]
    %v25 = vmul.f32 %v24, 1.442695
    %v26 = vpow.pop %v25
    %v27 = vld [vmem:[#allocation2] sm:$0x3]
    %v29 = vlaneseq
    %v30 = vshrl.u32 %v29, 7
    %v31 = vsub.s32 0, %v30
    %v32 = vrot.slane %v26, %v31
    %v34 = vmul.f32 %v32, %v27
    %35 = vst [vmem:[#allocation5] sm:$0x3] %v34
    // Predicated region
    $region14: #{tpu_custom_call.1} parent=1 // pred_check
      _
    $region15: #{tpu_custom_call.1} parent=1 // pred_check_branch
      %37 = sbr.rel (0) target = $region17
    $region16: #{tpu_custom_call.1} parent=1 // pred_region
      %s39 = ssub.s32 32, 32
      %40 = vsyncadd [#allocation4], %s39
      %s42 = sshll.u32 [#allocation5], 4
      %s43 = int_to_ptr.vmem [resolvable:$true] %s42
      %45 = dma.vmem_to_hbm [thread:$0]  %s43, 32, %s2, [#allocation4]
    $region17: #{tpu_custom_call.1} parent=1 // pred_fallthru
      _
    // Predicated region
    $region18: #{tpu_custom_call.1} parent=1 // pred_check
      _
    $region19: #{tpu_custom_call.1} parent=1 // pred_check_branch
      %47 = sbr.rel (0) target = $region21
    $region20: #{tpu_custom_call.1} parent=1 // pred_region
      %48 = dma.done [#allocation4], 32
    $region21: #{tpu_custom_call.1} parent=1 // pred_fallthru
      _
    %49 = vsyncpa [#allocation3], 1
    %50 = vsyncpa [#allocation4], 1

</llo_original>
